<compile_context>
chip_gen: v7x
topology: tpu7x:2x2x1
jax: 0.10.0
libtpu: 0.0.40
codegen_flags: <defaults>
</compile_context>

<pallas_src>
import functools

import jax
import jax.numpy as jnp
from jax.experimental import pallas as pl
from jax.experimental.pallas import tpu as pltpu


def _round_up(x, m):
    return ((x + m - 1) // m) * m


# ----------------------------- kernel ---------------------------------------


def _ffn_ln_kernel(x_ref, w1_ref, b1_ref, w2_ref, b2_ref, g_ref, bt_ref,
                   o_ref, *scratch, eps, n_k):
    """One (row-tile, d_ff-slice) grid step.

    acc += relu(x @ W1_slice + b1_slice) @ W2_slice ; at the last slice:
    out = LayerNorm(x + acc + b2).
    """
    k = pl.program_id(1)
    x = x_ref[...]                                                   # MXU dtype

    h = jnp.dot(x, w1_ref[...], preferred_element_type=jnp.float32)
    h = jnp.maximum(h + b1_ref[...], 0.0)                           # bias + ReLU in f32
    part = jnp.dot(h.astype(w2_ref.dtype), w2_ref[...],
                   preferred_element_type=jnp.float32)

    def epilogue(y):
        y = y + b2_ref[...]
        z = x.astype(jnp.float32) + y                                # residual
        mean = jnp.mean(z, axis=-1, keepdims=True)
        zc = z - mean
        var = jnp.mean(zc * zc, axis=-1, keepdims=True)
        inv = jax.lax.rsqrt(var + eps)
        o_ref[...] = (zc * inv * g_ref[...] + bt_ref[...]).astype(o_ref.dtype)

    if n_k == 1:
        # Single reduction step: no accumulator scratch, no zero-init.
        epilogue(part)
    else:
        acc_ref = scratch[0]

        @pl.when(k == 0)
        def _():
            acc_ref[...] = part            # init with the first dot (no zero-fill)

        @pl.when(k > 0)
        def _():
            acc_ref[...] += part

        @pl.when(k == n_k - 1)
        def _():
            epilogue(acc_ref[...])


# ----------------------------- tiling heuristics ----------------------------


def _chip_info():
    """Return (tpu_generation, vmem_budget_bytes)."""
    gen = 6
    try:
        kind = jax.devices()[0].device_kind.lower()
        if "v5" in kind:
            gen = 5
        elif "v6" in kind or "trillium" in kind:
            gen = 6
        elif "v7" in kind:
            gen = 7
        elif "v2" in kind or "v3" in kind or "v4" in kind:
            gen = 5          # older chips: conservative (128-row MXU) tiling
    except Exception:
        pass
    vmem_phys = None
    try:
        vmem_phys = int(pltpu.get_tpu_info().vmem_capacity_bytes)
    except Exception:
        vmem_phys = None
    if not vmem_phys:
        vmem_phys = (64 << 20) if gen >= 7 else (128 << 20)
    # Leave headroom below physical VMEM: ~48 MiB on v7x, ~96 MiB on v5e/v6e.
    return gen, (vmem_phys * 3) // 4


def _default_tm(n_rows, gen):
    # v6e needs ~650 flops/byte to stay MXU-bound while re-streaming weights
    # per row tile -> prefer 1024 rows there; 512 is enough on v5e/v7x.
    prefs = {5: (512, 256, 128), 6: (1024, 512, 256), 7: (512, 256)}.get(
        gen, (512, 256, 128))
    for cand in prefs:
        if n_rows >= cand:
            return cand
    # Small N: one row tile on single-TensorCore chips (v5e/v6e); only split
    # across the two v7x TensorCores when there is enough work for both.
    if gen >= 7 and n_rows >= 16:
        return max(8, _round_up(pl.cdiv(n_rows, 2), 8))
    return max(8, _round_up(n_rows, 8))


def _vmem_estimate(tm, tk, d_in, cdt_size, out_size, n_k):
    w_bufs = 1 if n_k == 1 else 2          # constant index maps -> Buffered(1)
    est = 2 * tm * d_in * cdt_size         # x tile (double-buffered)
    est += w_bufs * d_in * tk * cdt_size   # W1 slice
    est += w_bufs * tk * 4                 # b1 slice (f32)
    est += w_bufs * tk * d_in * cdt_size   # W2 slice
    est += 3 * d_in * 4                    # b2 / gamma / beta (f32, single-buffered)
    est += 2 * tm * d_in * out_size        # output tile
    if n_k > 1:
        est += tm * d_in * 4               # f32 accumulator scratch
    est += tm * tk * 4                     # f32 `h` intermediate
    est += 2 * tm * d_in * 4               # f32 residual / layernorm temporaries
    est += 2 << 20                         # fixed headroom
    return est


def _default_tk(d_ff, d_in, tm, cdt_size, out_size, gen, budget):
    # Prefer tk == d_ff (weights fully VMEM-resident, fetched once) on
    # v5e/v6e; cap at 1024 on v7x (64 MiB VMEM + (tm, tk) f32 intermediate).
    cap = d_ff if gen != 7 else min(d_ff, 1024)
    cands = []
    if d_ff <= cap:
        cands.append(d_ff)
    for c in (2048, 1024, 512, 256, 128):
        if c <= cap and c < d_ff and d_ff % c == 0:
            cands.append(c)
    if not cands:
        cands.append(d_ff)
    for tk in cands:
        n_k = d_ff // tk
        if _vmem_estimate(tm, tk, d_in, cdt_size, out_size, n_k) <= budget:
            return tk
    return cands[-1]


def _bspec(shape, index_map, *, single=False):
    """BlockSpec; request single buffering when the block index is constant."""
    if single and hasattr(pl, "Buffered"):
        try:
            return pl.BlockSpec(shape, index_map, pipeline_mode=pl.Buffered(1))
        except Exception:
            pass
    return pl.BlockSpec(shape, index_map)


# ----------------------------- wrapper ---------------------------------------


def decoder_ffn_layernorm(x, w1, b1, w2, b2, gamma, beta, *, eps=1e-5,
                          tm=None, tk=None, cast_f32_to_bf16=True):
    """out = LayerNorm(x + relu(x @ W1 + b1) @ W2 + b2).

    x: [..., d_in]; w1: [d_in, d_ff]; b1: [d_ff]; w2: [d_ff, d_in];
    b2, gamma, beta: [d_in].  d_in should be a multiple of 128 for lane-dense
    stores (it is for the module default 256).
    """
    d_in, d_ff = w1.shape
    assert w2.shape == (d_ff, d_in)
    assert b1.shape == (d_ff,) and b2.shape == (d_in,)
    assert gamma.shape == (d_in,) and beta.shape == (d_in,)

    orig_shape = x.shape
    out_dtype = x.dtype

    xf = x.reshape(-1, d_in)
    n_rows = xf.shape[0]

    # MXU operand dtype: f32 callers are cast to bf16 (f32 accumulation) by
    # default -- the f32 MXU path is 3-8x slower (and absent on v7x).
    cdt = jnp.bfloat16 if (cast_f32_to_bf16 and x.dtype == jnp.float32) else x.dtype
    xf = xf.astype(cdt)
    w1c = w1.astype(cdt)
    w2c = w2.astype(cdt)
    cdt_size = jnp.dtype(cdt).itemsize
    out_size = jnp.dtype(out_dtype).itemsize

    gen, budget = _chip_info()

    if tm is None:
        tm = _default_tm(n_rows, gen)
    tm = max(8, _round_up(min(tm, _round_up(n_rows, 8)), 8))

    if tk is None:
        tk = _default_tk(d_ff, d_in, tm, cdt_size, out_size, gen, budget)
    assert d_ff % tk == 0 and (tk % 128 == 0 or tk == d_ff), (
        "tk must divide d_ff and be a multiple of 128 (or equal d_ff)")
    n_k = d_ff // tk

    # Respect the VMEM budget (matters on v7x's 64 MiB per TensorCore).
    while tm > 128 and _vmem_estimate(tm, tk, d_in, cdt_size, out_size, n_k) > budget:
        tm = max(128, tm // 2)

    # Pad rows to a tile multiple; padded rows are dropped after the call.
    n_pad = _round_up(n_rows, tm)
    if n_pad != n_rows:
        xf = jnp.pad(xf, ((0, n_pad - n_rows), (0, 0)))

    # Small f32 params: bias / LayerNorm math stays on the f32 VPU path.
    b1r = b1.reshape(1, d_ff).astype(jnp.float32)
    b2r = b2.reshape(1, d_in).astype(jnp.float32)
    gr = gamma.reshape(1, d_in).astype(jnp.float32)
    br = beta.reshape(1, d_in).astype(jnp.float32)

    grid = (n_pad // tm, n_k)
    single_w = (n_k == 1)   # weight index maps constant over the whole grid

    in_specs = [
        pl.BlockSpec((tm, d_in), lambda i, k: (i, 0)),                 # x
        _bspec((d_in, tk), lambda i, k: (0, k), single=single_w),      # W1
        _bspec((1, tk), lambda i, k: (0, k), single=single_w),         # b1
        _bspec((tk, d_in), lambda i, k: (k, 0), single=single_w),      # W2
        _bspec((1, d_in), lambda i, k: (0, 0), single=True),           # b2
        _bspec((1, d_in), lambda i, k: (0, 0), single=True),           # gamma
        _bspec((1, d_in), lambda i, k: (0, 0), single=True),           # beta
    ]
    out_spec = pl.BlockSpec((tm, d_in), lambda i, k: (i, 0))
    out_shape = jax.ShapeDtypeStruct((n_pad, d_in), out_dtype)
    scratch = [] if n_k == 1 else [pltpu.VMEM((tm, d_in), jnp.float32)]

    est = _vmem_estimate(tm, tk, d_in, cdt_size, out_size, n_k)
    vmem_limit = int(min(budget, max(est + (8 << 20), 32 << 20)))

    kernel = functools.partial(_ffn_ln_kernel, eps=float(eps), n_k=n_k)

    out = pl.pallas_call(
        kernel,
        out_shape=out_shape,
        grid_spec=pltpu.PrefetchScalarGridSpec(
            num_scalar_prefetch=0,
            grid=grid,
            in_specs=in_specs,
            out_specs=out_spec,
            scratch_shapes=scratch),
        compiler_params=pltpu.CompilerParams(
            dimension_semantics=("parallel", "arbitrary"),
            vmem_limit_bytes=vmem_limit),
    )(xf, w1c, b1r, w2c, b2r, gr, br)

    if n_pad != n_rows:
        out = out[:n_rows]
    return out.reshape(orig_shape)


# ----------------------------- reference & test ------------------------------


def _reference(x, w1, b1, w2, b2, gamma, beta, eps=1e-5):
    f32 = jnp.float32
    x = x.astype(f32)
    h = jnp.maximum(x @ w1.astype(f32) + b1.astype(f32), 0.0)
    y = h @ w2.astype(f32) + b2.astype(f32)
    z = x + y
    mean = z.mean(-1, keepdims=True)
    var = ((z - mean) ** 2).mean(-1, keepdims=True)
    return (z - mean) / jnp.sqrt(var + eps) * gamma.astype(f32) + beta.astype(f32)


def _assert_close(name, out, ref, atol, rtol):
    out = jnp.asarray(out, jnp.float32)
    ref = jnp.asarray(ref, jnp.float32)
    err = float(jnp.max(jnp.abs(out - ref)))
    assert bool(jnp.allclose(out, ref, atol=atol, rtol=rtol)), (
        f"{name}: max abs err {err:.4e} exceeds atol={atol}, rtol={rtol}")


if __name__ == "__main__":
    in_model, dim_feedforward = 256, 512       # DecoderLayer defaults
    batch, seq = 2, 8
    eps = 1e-5

    key = jax.random.PRNGKey(0)
    kx, k1, k2, k3, k4, kg, kb = jax.random.split(key, 7)

    x32 = jax.random.normal(kx, (batch, seq, in_model), dtype=jnp.float32)

    bound1 = 1.0 / (in_model ** 0.5)
    bound2 = 1.0 / (dim_feedforward ** 0.5)
    # Weights stored [in, out] (transposed vs. PyTorch's [out, in]).
    w1_32 = jax.random.uniform(k1, (in_model, dim_feedforward), jnp.float32, -bound1, bound1)
    b1_32 = jax.random.uniform(k2, (dim_feedforward,), jnp.float32, -bound1, bound1)
    w2_32 = jax.random.uniform(k3, (dim_feedforward, in_model), jnp.float32, -bound2, bound2)
    b2_32 = jax.random.uniform(k4, (in_model,), jnp.float32, -bound2, bound2)
    g_32 = jax.random.uniform(kg, (in_model,), jnp.float32, 0.5, 1.5)
    be_32 = 0.1 * jax.random.normal(kb, (in_model,), dtype=jnp.float32)

    x_bf = x32.astype(jnp.bfloat16)
    w1_bf = w1_32.astype(jnp.bfloat16)
    w2_bf = w2_32.astype(jnp.bfloat16)

    # Case 1: bf16 operands, default tiling (tk == d_ff -> resident,
    # single-buffered weights; single row tile on 1-TC chips).
    out1 = jax.block_until_ready(decoder_ffn_layernorm(
        x_bf, w1_bf, b1_32, w2_bf, b2_32, g_32, be_32, eps=eps))
    ref1 = _reference(x_bf, w1_bf, b1_32, w2_bf, b2_32, g_32, be_32, eps=eps)
    assert out1.dtype == jnp.bfloat16 and out1.shape == x_bf.shape
    _assert_close("case1", out1, ref1, 5e-2, 5e-2)

    # Case 2: ragged rows (14) + forced small tiles -> exercises the d_ff
    # accumulation path, row padding and multiple row tiles.
    x_r = x_bf[:, :7]
    out2 = jax.block_until_ready(decoder_ffn_layernorm(
        x_r, w1_bf, b1_32, w2_bf, b2_32, g_32, be_32, eps=eps, tm=8, tk=128))
    ref2 = _reference(x_r, w1_bf, b1_32, w2_bf, b2_32, g_32, be_32, eps=eps)
    assert out2.shape == x_r.shape
    _assert_close("case2", out2, ref2, 5e-2, 5e-2)

    # Case 3: f32 caller -> MXU operands cast to bf16 (f32 accumulation),
    # f32 output dtype preserved.
    out3 = jax.block_until_ready(decoder_ffn_layernorm(
        x32, w1_32, b1_32, w2_32, b2_32, g_32, be_32, eps=eps))
    ref3 = _reference(x32, w1_32, b1_32, w2_32, b2_32, g_32, be_32, eps=eps)
    assert out3.dtype == jnp.float32
    _assert_close("case3", out3, ref3, 5e-2, 5e-2)

    # Case 4: pure f32 MXU path (cast flag off).
    out4 = jax.block_until_ready(decoder_ffn_layernorm(
        x32, w1_32, b1_32, w2_32, b2_32, g_32, be_32, eps=eps,
        cast_f32_to_bf16=False))
    _assert_close("case4", out4, ref3, 2e-2, 2e-2)

    print("KERNEL_OK")
</pallas_src>

<mosaic_0001>
module attributes {stable_mosaic.version = 11 : i64} {
  func.func @_ffn_ln_kernel(%arg0: i32, %arg1: i32, %arg2: memref<16x256xbf16, #tpu.memory_space<vmem>>, %arg3: memref<256x512xbf16, #tpu.memory_space<vmem>>, %arg4: memref<1x512xf32, #tpu.memory_space<vmem>>, %arg5: memref<512x256xbf16, #tpu.memory_space<vmem>>, %arg6: memref<1x256xf32, #tpu.memory_space<vmem>>, %arg7: memref<1x256xf32, #tpu.memory_space<vmem>>, %arg8: memref<1x256xf32, #tpu.memory_space<vmem>>, %arg9: memref<16x256xbf16, #tpu.memory_space<vmem>>) attributes {dimension_semantics = [#tpu.dimension_semantics<parallel>, #tpu.dimension_semantics<arbitrary>], iteration_bounds = array<i64: 1, 1>, scalar_prefetch = 0 : i64, scratch_operands = 0 : i64, tpu.core_type = #tpu.core_type<tc>, window_params = [{transform_indices = @transform_0, window_bounds = array<i64: 16, 256>}, {pipeline_mode = #tpu.pipeline_mode<synchronous>, transform_indices = @transform_1, window_bounds = array<i64: 256, 512>}, {pipeline_mode = #tpu.pipeline_mode<synchronous>, transform_indices = @transform_2, window_bounds = array<i64: 1, 512>}, {pipeline_mode = #tpu.pipeline_mode<synchronous>, transform_indices = @transform_3, window_bounds = array<i64: 512, 256>}, {pipeline_mode = #tpu.pipeline_mode<synchronous>, transform_indices = @transform_4, window_bounds = array<i64: 1, 256>}, {pipeline_mode = #tpu.pipeline_mode<synchronous>, transform_indices = @transform_5, window_bounds = array<i64: 1, 256>}, {pipeline_mode = #tpu.pipeline_mode<synchronous>, transform_indices = @transform_6, window_bounds = array<i64: 1, 256>}, {transform_indices = @transform_7, window_bounds = array<i64: 16, 256>}]} {
    %c0 = arith.constant 0 : index
    %c0_0 = arith.constant 0 : index
    %0 = vector.load %arg2[%c0, %c0_0] : memref<16x256xbf16, #tpu.memory_space<vmem>>, vector<16x256xbf16>
    %c0_1 = arith.constant 0 : index
    %c0_2 = arith.constant 0 : index
    %1 = vector.load %arg3[%c0_1, %c0_2] : memref<256x512xbf16, #tpu.memory_space<vmem>>, vector<256x512xbf16>
    %cst = arith.constant dense<0.000000e+00> : vector<16x512xf32>
    %2 = tpu.matmul %0, %1, %cst {dimension_numbers = #tpu.dot_dimension_numbers<[1], [0], [0], [1], [0, 0, 1, 1], [], []>} : vector<16x256xbf16>, vector<256x512xbf16>, vector<16x512xf32> -> vector<16x512xf32>
    %c0_3 = arith.constant 0 : index
    %c0_4 = arith.constant 0 : index
    %3 = vector.load %arg4[%c0_3, %c0_4] : memref<1x512xf32, #tpu.memory_space<vmem>>, vector<1x512xf32>
    %4 = vector.broadcast %3 : vector<1x512xf32> to vector<16x512xf32>
    %5 = arith.addf %2, %4 : vector<16x512xf32>
    %cst_5 = arith.constant 0.000000e+00 : f32
    %6 = vector.broadcast %cst_5 : f32 to vector<16x512xf32>
    %7 = arith.maximumf %5, %6 : vector<16x512xf32>
    %8 = arith.truncf %7 : vector<16x512xf32> to vector<16x512xbf16>
    %c0_6 = arith.constant 0 : index
    %c0_7 = arith.constant 0 : index
    %9 = vector.load %arg5[%c0_6, %c0_7] : memref<512x256xbf16, #tpu.memory_space<vmem>>, vector<512x256xbf16>
    %cst_8 = arith.constant dense<0.000000e+00> : vector<16x256xf32>
    %10 = tpu.matmul %8, %9, %cst_8 {dimension_numbers = #tpu.dot_dimension_numbers<[1], [0], [0], [1], [0, 0, 1, 1], [], []>} : vector<16x512xbf16>, vector<512x256xbf16>, vector<16x256xf32> -> vector<16x256xf32>
    %c0_9 = arith.constant 0 : index
    %c0_10 = arith.constant 0 : index
    %11 = vector.load %arg6[%c0_9, %c0_10] : memref<1x256xf32, #tpu.memory_space<vmem>>, vector<1x256xf32>
    %12 = vector.broadcast %11 : vector<1x256xf32> to vector<16x256xf32>
    %13 = arith.addf %10, %12 : vector<16x256xf32>
    %14 = arith.extf %0 : vector<16x256xbf16> to vector<16x256xf32>
    %15 = arith.addf %14, %13 : vector<16x256xf32>
    %cst_11 = arith.constant dense<0.000000e+00> : vector<16xf32>
    %16 = vector.multi_reduction <add>, %15, %cst_11 [1] : vector<16x256xf32> to vector<16xf32>
    %17 = vector.shape_cast %16 : vector<16xf32> to vector<16x1xf32>
    %cst_12 = arith.constant 2.560000e+02 : f32
    %18 = vector.broadcast %cst_12 : f32 to vector<16x1xf32>
    %19 = arith.divf %17, %18 : vector<16x1xf32>
    %20 = vector.broadcast %19 : vector<16x1xf32> to vector<16x256xf32>
    %21 = arith.subf %15, %20 : vector<16x256xf32>
    %22 = arith.mulf %21, %21 : vector<16x256xf32>
    %cst_13 = arith.constant dense<0.000000e+00> : vector<16xf32>
    %23 = vector.multi_reduction <add>, %22, %cst_13 [1] : vector<16x256xf32> to vector<16xf32>
    %24 = vector.shape_cast %23 : vector<16xf32> to vector<16x1xf32>
    %cst_14 = arith.constant 2.560000e+02 : f32
    %25 = vector.broadcast %cst_14 : f32 to vector<16x1xf32>
    %26 = arith.divf %24, %25 : vector<16x1xf32>
    %cst_15 = arith.constant 9.99999974E-6 : f32
    %27 = vector.broadcast %cst_15 : f32 to vector<16x1xf32>
    %28 = arith.addf %26, %27 : vector<16x1xf32>
    %29 = math.rsqrt %28 : vector<16x1xf32>
    %30 = vector.broadcast %29 : vector<16x1xf32> to vector<16x256xf32>
    %31 = arith.mulf %21, %30 : vector<16x256xf32>
    %c0_16 = arith.constant 0 : index
    %c0_17 = arith.constant 0 : index
    %32 = vector.load %arg7[%c0_16, %c0_17] : memref<1x256xf32, #tpu.memory_space<vmem>>, vector<1x256xf32>
    %33 = vector.broadcast %32 : vector<1x256xf32> to vector<16x256xf32>
    %34 = arith.mulf %31, %33 : vector<16x256xf32>
    %c0_18 = arith.constant 0 : index
    %c0_19 = arith.constant 0 : index
    %35 = vector.load %arg8[%c0_18, %c0_19] : memref<1x256xf32, #tpu.memory_space<vmem>>, vector<1x256xf32>
    %36 = vector.broadcast %35 : vector<1x256xf32> to vector<16x256xf32>
    %37 = arith.addf %34, %36 : vector<16x256xf32>
    %38 = arith.truncf %37 : vector<16x256xf32> to vector<16x256xbf16>
    %c0_20 = arith.constant 0 : index
    %c0_21 = arith.constant 0 : index
    %39 = vector.load %arg9[%c0_20, %c0_21] : memref<16x256xbf16, #tpu.memory_space<vmem>>, vector<16x256xbf16>
    tpu.vector_store %arg9[%c0_20, %c0_21], %38 {strides = array<i32>} : memref<16x256xbf16, #tpu.memory_space<vmem>>, vector<16x256xbf16>,
    return
  }
  func.func @transform_0(%arg0: i32, %arg1: i32) -> (i32, i32) {
    %c0_i32 = arith.constant 0 : i32
    %c0_i32_0 = arith.constant 0 : i32
    return %arg0, %c0_i32 : i32, i32
  }
  func.func @transform_1(%arg0: i32, %arg1: i32) -> (i32, i32) {
    %c0_i32 = arith.constant 0 : i32
    %c0_i32_0 = arith.constant 0 : i32
    return %c0_i32, %arg1 : i32, i32
  }
  func.func @transform_2(%arg0: i32, %arg1: i32) -> (i32, i32) {
    %c0_i32 = arith.constant 0 : i32
    %c0_i32_0 = arith.constant 0 : i32
    return %c0_i32, %arg1 : i32, i32
  }
  func.func @transform_3(%arg0: i32, %arg1: i32) -> (i32, i32) {
    %c0_i32 = arith.constant 0 : i32
    %c0_i32_0 = arith.constant 0 : i32
    return %arg1, %c0_i32 : i32, i32
  }
  func.func @transform_4(%arg0: i32, %arg1: i32) -> (i32, i32) {
    %c0_i32 = arith.constant 0 : i32
    %c0_i32_0 = arith.constant 0 : i32
    %c0_i32_1 = arith.constant 0 : i32
    return %c0_i32, %c0_i32_0 : i32, i32
  }
  func.func @transform_5(%arg0: i32, %arg1: i32) -> (i32, i32) {
    %c0_i32 = arith.constant 0 : i32
    %c0_i32_0 = arith.constant 0 : i32
    %c0_i32_1 = arith.constant 0 : i32
    return %c0_i32, %c0_i32_0 : i32, i32
  }
  func.func @transform_6(%arg0: i32, %arg1: i32) -> (i32, i32) {
    %c0_i32 = arith.constant 0 : i32
    %c0_i32_0 = arith.constant 0 : i32
    %c0_i32_1 = arith.constant 0 : i32
    return %c0_i32, %c0_i32_0 : i32, i32
  }
  func.func @transform_7(%arg0: i32, %arg1: i32) -> (i32, i32) {
    %c0_i32 = arith.constant 0 : i32
    %c0_i32_0 = arith.constant 0 : i32
    return %arg0, %c0_i32 : i32, i32
  }
}

</mosaic_0001>

<llo_original>
// kernel: tpu_custom_call.1
$region0: #{tpu_custom_call.1}
  #allocation0 [shape = 'u32[]', space=smem, size = 0x4, offset = 0x4, fixed_abs, tag = 'smem constant byte address 0x4 - core index']
  #allocation1 [shape = 'u32[144,128]{1,0:T(1,128)}', space=vmem, size = 0x12000, scoped, tag = 'internal scratch']
  %s0 = inlined_call_operand.hbm [shape: bf16[16,256], index: 0, kind: input, shape index: {}]
  %s1 = inlined_call_operand.hbm [shape: bf16[256,512], index: 1, kind: input, shape index: {}]
  %s2 = inlined_call_operand.vmem [shape: f32[1,512], index: 2, kind: input, shape index: {}]
  %s3 = inlined_call_operand.hbm [shape: bf16[512,256], index: 3, kind: input, shape index: {}]
  %s4 = inlined_call_operand.vmem [shape: f32[1,256], index: 4, kind: input, shape index: {}]
  %s5 = inlined_call_operand.vmem [shape: f32[1,256], index: 5, kind: input, shape index: {}]
  %s6 = inlined_call_operand.vmem [shape: f32[1,256], index: 6, kind: input, shape index: {}]
  %s7 = inlined_call_operand.hbm [shape: bf16[16,256], index: 7, kind: output, shape index: {}]
  %s8 = sld [smem:[#allocation0]]
  $region50: #{tpu_custom_call.1} parent=0
    _
  %s10 = ssub.s32 1, %s8
  %s11 = scalar_select 0, %s10, %s8
  $region1: #{tpu_custom_call.1} parent=0
    #allocation2 [shape = 'u8[8192]{0}', space=vmem, size = 0x2000, scoped, tag = 'input window, operand 0, single buffered']
    #allocation3 [shape = 's32[1]{0}', space=sflag, size = 0x4, scoped, tag = 'scoped memory for tpu_custom_call.1']
    #allocation4 [shape = 's32[1]{0}', space=sflag, size = 0x4, scoped, tag = 'scoped memory for tpu_custom_call.1']
    #allocation5 [shape = 'u8[262144]{0}', space=vmem, size = 0x40000, scoped, tag = 'input window, operand 1, single buffered']
    #allocation6 [shape = 's32[1]{0}', space=sflag, size = 0x4, scoped, tag = 'scoped memory for tpu_custom_call.1']
    #allocation7 [shape = 'u8[262144]{0}', space=vmem, size = 0x40000, scoped, tag = 'input window, operand 3, single buffered']
    #allocation8 [shape = 'u8[8192]{0}', space=vmem, size = 0x2000, scoped, tag = 'output window, operand 0, single buffered']
    %12 = vsyncpa [#allocation3], 0
    %13 = vsyncpa [#allocation6], 0
    %14 = vsyncpa [#allocation4], 0
    // Predicated region
    $region2: #{tpu_custom_call.1} parent=1 // pred_check
      _
    $region3: #{tpu_custom_call.1} parent=1 // pred_check_branch
      %16 = sbr.rel (0) target = $region5
    $region4: #{tpu_custom_call.1} parent=1 // pred_region
      %s18 = ssub.s32 256, 256
      %19 = vsyncadd [#allocation3], %s18
      %s20 = sshll.u32 [#allocation2], 4
      %s21 = int_to_ptr.vmem [resolvable:$true] %s20
      %26 = dma.hbm_to_vmem [thread:$0]  %s0, 256, %s21, [#allocation3], 128, 128, 8
    $region5: #{tpu_custom_call.1} parent=1 // pred_fallthru
      _
    // Predicated region
    $region6: #{tpu_custom_call.1} parent=1 // pred_check
      _
    $region7: #{tpu_custom_call.1} parent=1 // pred_check_branch
      %28 = sbr.rel (0) target = $region9
    $region8: #{tpu_custom_call.1} parent=1 // pred_region
      %s30 = ssub.s32 8192, 8192
      %31 = vsyncadd [#allocation6], %s30
      %s32 = sshll.u32 [#allocation5], 4
      %s33 = int_to_ptr.vmem [resolvable:$true] %s32
      %38 = dma.hbm_to_vmem [thread:$0]  %s1, 8192, %s33, [#allocation6], 256, 256, 16
    $region9: #{tpu_custom_call.1} parent=1 // pred_fallthru
      _
    // Predicated region
    $region10: #{tpu_custom_call.1} parent=1 // pred_check
      _
    $region11: #{tpu_custom_call.1} parent=1 // pred_check_branch
      %40 = sbr.rel (0) target = $region13
    $region12: #{tpu_custom_call.1} parent=1 // pred_region
      _
    $region13: #{tpu_custom_call.1} parent=1 // pred_fallthru
      _
    // Predicated region
    $region14: #{tpu_custom_call.1} parent=1 // pred_check
      _
    $region15: #{tpu_custom_call.1} parent=1 // pred_check_branch
      %42 = sbr.rel (0) target = $region17
    $region16: #{tpu_custom_call.1} parent=1 // pred_region
      %s44 = ssub.s32 8192, 8192
      %45 = vsyncadd [#allocation6], %s44
      %s46 = sshll.u32 [#allocation7], 4
      %s47 = int_to_ptr.vmem [resolvable:$true] %s46
      %52 = dma.hbm_to_vmem [thread:$0]  %s3, 8192, %s47, [#allocation6], 128, 128, 8
    $region17: #{tpu_custom_call.1} parent=1 // pred_fallthru
      _
    // Predicated region
    $region18: #{tpu_custom_call.1} parent=1 // pred_check
      _
    $region19: #{tpu_custom_call.1} parent=1 // pred_check_branch
      %54 = sbr.rel (0) target = $region21
    $region20: #{tpu_custom_call.1} parent=1 // pred_region
      _
    $region21: #{tpu_custom_call.1} parent=1 // pred_fallthru
      _
    // Predicated region
    $region22: #{tpu_custom_call.1} parent=1 // pred_check
      _
    $region23: #{tpu_custom_call.1} parent=1 // pred_check_branch
      %56 = sbr.rel (0) target = $region25
    $region24: #{tpu_custom_call.1} parent=1 // pred_region
      _
    $region25: #{tpu_custom_call.1} parent=1 // pred_fallthru
      _
    // Predicated region
    $region26: #{tpu_custom_call.1} parent=1 // pred_check
      _
    $region27: #{tpu_custom_call.1} parent=1 // pred_check_branch
      %58 = sbr.rel (0) target = $region29
    $region28: #{tpu_custom_call.1} parent=1 // pred_region
      _
    $region29: #{tpu_custom_call.1} parent=1 // pred_fallthru
      _
    // Predicated region
    $region30: #{tpu_custom_call.1} parent=1 // pred_check
      _
    $region31: #{tpu_custom_call.1} parent=1 // pred_check_branch
      %60 = sbr.rel (0) target = $region33
    $region32: #{tpu_custom_call.1} parent=1 // pred_region
      %61 = dma.done [#allocation3], 256
    $region33: #{tpu_custom_call.1} parent=1 // pred_fallthru
      _
    // Predicated region
    $region34: #{tpu_custom_call.1} parent=1 // pred_check
      _
    $region35: #{tpu_custom_call.1} parent=1 // pred_check_branch
      %63 = sbr.rel (0) target = $region37
    $region36: #{tpu_custom_call.1} parent=1 // pred_region
      %64 = dma.done [#allocation6], 8192
    $region37: #{tpu_custom_call.1} parent=1 // pred_fallthru
      _
    // Predicated region
    $region38: #{tpu_custom_call.1} parent=1 // pred_check
      _
    $region39: #{tpu_custom_call.1} parent=1 // pred_check_branch
      %66 = sbr.rel (0) target = $region41
    $region40: #{tpu_custom_call.1} parent=1 // pred_region
      %67 = dma.done [#allocation6], 8192
    $region41: #{tpu_custom_call.1} parent=1 // pred_fallthru
      _
    %v68 = vld [vmem:[#allocation2] sm:$0xff]
    %v69 = vld [vmem:[#allocation2 + $0x8] sm:$0xff]
    %v70 = vld [vmem:[#allocation5] sm:$0xff]
    %v71 = vld [vmem:[#allocation5 + $0x8] sm:$0xff]
    %v72 = vld [vmem:[#allocation5 + $0x10] sm:$0xff]
    %v73 = vld [vmem:[#allocation5 + $0x18] sm:$0xff]
    %v74 = vld [vmem:[#allocation5 + $0x20] sm:$0xff]
    %v75 = vld [vmem:[#allocation5 + $0x28] sm:$0xff]
    %v76 = vld [vmem:[#allocation5 + $0x30] sm:$0xff]
    %v77 = vld [vmem:[#allocation5 + $0x38] sm:$0xff]
    %v78 = vld [vmem:[#allocation5 + $0x40] sm:$0xff]
    %v79 = vld [vmem:[#allocation5 + $0x48] sm:$0xff]
    %v80 = vld [vmem:[#allocation5 + $0x50] sm:$0xff]
    %v81 = vld [vmem:[#allocation5 + $0x58] sm:$0xff]
    %v82 = vld [vmem:[#allocation5 + $0x60] sm:$0xff]
    %v83 = vld [vmem:[#allocation5 + $0x68] sm:$0xff]
    %v84 = vld [vmem:[#allocation5 + $0x70] sm:$0xff]
    %v85 = vld [vmem:[#allocation5 + $0x78] sm:$0xff]
    %v86 = vld [vmem:[#allocation5 + $0x80] sm:$0xff]
    %v87 = vld [vmem:[#allocation5 + $0x88] sm:$0xff]
    %v88 = vld [vmem:[#allocation5 + $0x90] sm:$0xff]
    %v89 = vld [vmem:[#allocation5 + $0x98] sm:$0xff]
    %v90 = vld [vmem:[#allocation5 + $0xa0] sm:$0xff]
    %v91 = vld [vmem:[#allocation5 + $0xa8] sm:$0xff]
    %v92 = vld [vmem:[#allocation5 + $0xb0] sm:$0xff]
    %v93 = vld [vmem:[#allocation5 + $0xb8] sm:$0xff]
    %v94 = vld [vmem:[#allocation5 + $0xc0] sm:$0xff]
    %v95 = vld [vmem:[#allocation5 + $0xc8] sm:$0xff]
    %v96 = vld [vmem:[#allocation5 + $0xd0] sm:$0xff]
    %v97 = vld [vmem:[#allocation5 + $0xd8] sm:$0xff]
    %v98 = vld [vmem:[#allocation5 + $0xe0] sm:$0xff]
    %v99 = vld [vmem:[#allocation5 + $0xe8] sm:$0xff]
    %v100 = vld [vmem:[#allocation5 + $0xf0] sm:$0xff]
    %v101 = vld [vmem:[#allocation5 + $0xf8] sm:$0xff]
    %v102 = vld [vmem:[#allocation5 + $0x100] sm:$0xff]
    %v103 = vld [vmem:[#allocation5 + $0x108] sm:$0xff]
    %v104 = vld [vmem:[#allocation5 + $0x110] sm:$0xff]
    %v105 = vld [vmem:[#allocation5 + $0x118] sm:$0xff]
    %v106 = vld [vmem:[#allocation5 + $0x120] sm:$0xff]
    %v107 = vld [vmem:[#allocation5 + $0x128] sm:$0xff]
    %v108 = vld [vmem:[#allocation5 + $0x130] sm:$0xff]
    %v109 = vld [vmem:[#allocation5 + $0x138] sm:$0xff]
    %v110 = vld [vmem:[#allocation5 + $0x140] sm:$0xff]
    %v111 = vld [vmem:[#allocation5 + $0x148] sm:$0xff]
    %v112 = vld [vmem:[#allocation5 + $0x150] sm:$0xff]
    %v113 = vld [vmem:[#allocation5 + $0x158] sm:$0xff]
    %v114 = vld [vmem:[#allocation5 + $0x160] sm:$0xff]
    %v115 = vld [vmem:[#allocation5 + $0x168] sm:$0xff]
    %v116 = vld [vmem:[#allocation5 + $0x170] sm:$0xff]
    %v117 = vld [vmem:[#allocation5 + $0x178] sm:$0xff]
    %v118 = vld [vmem:[#allocation5 + $0x180] sm:$0xff]
    %v119 = vld [vmem:[#allocation5 + $0x188] sm:$0xff]
    %v120 = vld [vmem:[#allocation5 + $0x190] sm:$0xff]
    %v121 = vld [vmem:[#allocation5 + $0x198] sm:$0xff]
    %v122 = vld [vmem:[#allocation5 + $0x1a0] sm:$0xff]
    %v123 = vld [vmem:[#allocation5 + $0x1a8] sm:$0xff]
    %v124 = vld [vmem:[#allocation5 + $0x1b0] sm:$0xff]
    %v125 = vld [vmem:[#allocation5 + $0x1b8] sm:$0xff]
    %v126 = vld [vmem:[#allocation5 + $0x1c0] sm:$0xff]
    %v127 = vld [vmem:[#allocation5 + $0x1c8] sm:$0xff]
    %v128 = vld [vmem:[#allocation5 + $0x1d0] sm:$0xff]
    %v129 = vld [vmem:[#allocation5 + $0x1d8] sm:$0xff]
    %v130 = vld [vmem:[#allocation5 + $0x1e0] sm:$0xff]
    %v131 = vld [vmem:[#allocation5 + $0x1e8] sm:$0xff]
    %v132 = vld [vmem:[#allocation5 + $0x1f0] sm:$0xff]
    %v133 = vld [vmem:[#allocation5 + $0x1f8] sm:$0xff]
    %v134 = vld [vmem:[%s2] sm:$0xf]
    %v136 = vlaneseq
    %v137 = vshrl.u32 %v136, 7
    %v138 = vsub.s32 0, %v137
    %v139 = vrot.slane %v134, %v138
    %v140 = vlaneseq
    %v141 = vshrl.u32 %v140, 7
    %v142 = vsub.s32 1, %v141
    %v143 = vrot.slane %v134, %v142
    %v144 = vlaneseq
    %v145 = vshrl.u32 %v144, 7
    %v146 = vsub.s32 2, %v145
    %v147 = vrot.slane %v134, %v146
    %v148 = vlaneseq
    %v149 = vshrl.u32 %v148, 7
    %v150 = vsub.s32 3, %v149
    %v151 = vrot.slane %v134, %v150
    %v158 = vunpack.c.l.b16 %v68
    %v159 = vunpack.c.h.b16 %v68
    %v160 = vunpack.c.l.b16 %v69
    %v161 = vunpack.c.h.b16 %v69
    %v162 = vpack.c.b16 %v160, %v158
    %v163 = vpack.c.b16 %v161, %v159
    %v230 = vunpack.c.l.b16 %v70
    %v231 = vunpack.c.h.b16 %v70
    %v232 = vunpack.c.l.b16 %v71
    %v233 = vunpack.c.h.b16 %v71
    %v234 = vunpack.c.l.b16 %v72
    %v235 = vunpack.c.h.b16 %v72
    %v236 = vunpack.c.l.b16 %v73
    %v237 = vunpack.c.h.b16 %v73
    %v238 = vunpack.c.l.b16 %v74
    %v239 = vunpack.c.h.b16 %v74
    %v240 = vunpack.c.l.b16 %v75
    %v241 = vunpack.c.h.b16 %v75
    %v242 = vunpack.c.l.b16 %v76
    %v243 = vunpack.c.h.b16 %v76
    %v244 = vunpack.c.l.b16 %v77
    %v245 = vunpack.c.h.b16 %v77
    %v246 = vunpack.c.l.b16 %v78
    %v247 = vunpack.c.h.b16 %v78
    %v248 = vunpack.c.l.b16 %v79
    %v249 = vunpack.c.h.b16 %v79
    %v250 = vunpack.c.l.b16 %v80
    %v251 = vunpack.c.h.b16 %v80
    %v252 = vunpack.c.l.b16 %v81
    %v253 = vunpack.c.h.b16 %v81
    %v254 = vunpack.c.l.b16 %v82
    %v255 = vunpack.c.h.b16 %v82
    %v256 = vunpack.c.l.b16 %v83
    %v257 = vunpack.c.h.b16 %v83
    %v258 = vunpack.c.l.b16 %v84
    %v259 = vunpack.c.h.b16 %v84
    %v260 = vunpack.c.l.b16 %v85
    %v261 = vunpack.c.h.b16 %v85
    %v262 = vunpack.c.l.b16 %v86
    %v263 = vunpack.c.h.b16 %v86
    %v264 = vunpack.c.l.b16 %v87
    %v265 = vunpack.c.h.b16 %v87
    %v266 = vunpack.c.l.b16 %v88
    %v267 = vunpack.c.h.b16 %v88
    %v268 = vunpack.c.l.b16 %v89
    %v269 = vunpack.c.h.b16 %v89
    %v270 = vunpack.c.l.b16 %v90
    %v271 = vunpack.c.h.b16 %v90
    %v272 = vunpack.c.l.b16 %v91
    %v273 = vunpack.c.h.b16 %v91
    %v274 = vunpack.c.l.b16 %v92
    %v275 = vunpack.c.h.b16 %v92
    %v276 = vunpack.c.l.b16 %v93
    %v277 = vunpack.c.h.b16 %v93
    %v278 = vunpack.c.l.b16 %v94
    %v279 = vunpack.c.h.b16 %v94
    %v280 = vunpack.c.l.b16 %v95
    %v281 = vunpack.c.h.b16 %v95
    %v282 = vunpack.c.l.b16 %v96
    %v283 = vunpack.c.h.b16 %v96
    %v284 = vunpack.c.l.b16 %v97
    %v285 = vunpack.c.h.b16 %v97
    %v286 = vunpack.c.l.b16 %v98
    %v287 = vunpack.c.h.b16 %v98
    %v288 = vunpack.c.l.b16 %v99
    %v289 = vunpack.c.h.b16 %v99
    %v290 = vunpack.c.l.b16 %v100
    %v291 = vunpack.c.h.b16 %v100
    %v292 = vunpack.c.l.b16 %v101
    %v293 = vunpack.c.h.b16 %v101
    %v294 = vunpack.c.l.b16 %v102
    %v295 = vunpack.c.h.b16 %v102
    %v296 = vunpack.c.l.b16 %v103
    %v297 = vunpack.c.h.b16 %v103
    %v298 = vunpack.c.l.b16 %v104
    %v299 = vunpack.c.h.b16 %v104
    %v300 = vunpack.c.l.b16 %v105
    %v301 = vunpack.c.h.b16 %v105
    %v302 = vunpack.c.l.b16 %v106
    %v303 = vunpack.c.h.b16 %v106
    %v304 = vunpack.c.l.b16 %v107
    %v305 = vunpack.c.h.b16 %v107
    %v306 = vunpack.c.l.b16 %v108
    %v307 = vunpack.c.h.b16 %v108
    %v308 = vunpack.c.l.b16 %v109
    %v309 = vunpack.c.h.b16 %v109
    %v310 = vunpack.c.l.b16 %v110
    %v311 = vunpack.c.h.b16 %v110
    %v312 = vunpack.c.l.b16 %v111
    %v313 = vunpack.c.h.b16 %v111
    %v314 = vunpack.c.l.b16 %v112
    %v315 = vunpack.c.h.b16 %v112
    %v316 = vunpack.c.l.b16 %v113
    %v317 = vunpack.c.h.b16 %v113
    %v318 = vunpack.c.l.b16 %v114
    %v319 = vunpack.c.h.b16 %v114
    %v320 = vunpack.c.l.b16 %v115
    %v321 = vunpack.c.h.b16 %v115
    %v322 = vunpack.c.l.b16 %v116
    %v323 = vunpack.c.h.b16 %v116
    %v324 = vunpack.c.l.b16 %v117
    %v325 = vunpack.c.h.b16 %v117
    %v326 = vunpack.c.l.b16 %v118
    %v327 = vunpack.c.h.b16 %v118
    %v328 = vunpack.c.l.b16 %v119
    %v329 = vunpack.c.h.b16 %v119
    %v330 = vunpack.c.l.b16 %v120
    %v331 = vunpack.c.h.b16 %v120
    %v332 = vunpack.c.l.b16 %v121
    %v333 = vunpack.c.h.b16 %v121
    %v334 = vunpack.c.l.b16 %v122
    %v335 = vunpack.c.h.b16 %v122
    %v336 = vunpack.c.l.b16 %v123
    %v337 = vunpack.c.h.b16 %v123
    %v338 = vunpack.c.l.b16 %v124
    %v339 = vunpack.c.h.b16 %v124
    %v340 = vunpack.c.l.b16 %v125
    %v341 = vunpack.c.h.b16 %v125
    %v342 = vunpack.c.l.b16 %v126
    %v343 = vunpack.c.h.b16 %v126
    %v344 = vunpack.c.l.b16 %v127
    %v345 = vunpack.c.h.b16 %v127
    %v346 = vunpack.c.l.b16 %v128
    %v347 = vunpack.c.h.b16 %v128
    %v348 = vunpack.c.l.b16 %v129
    %v349 = vunpack.c.h.b16 %v129
    %v350 = vunpack.c.l.b16 %v130
    %v351 = vunpack.c.h.b16 %v130
    %v352 = vunpack.c.l.b16 %v131
    %v353 = vunpack.c.h.b16 %v131
    %v354 = vunpack.c.l.b16 %v132
    %v355 = vunpack.c.h.b16 %v132
    %v356 = vunpack.c.l.b16 %v133
    %v357 = vunpack.c.h.b16 %v133
    %v358 = vpack.c.b16 %v234, %v230
    %v359 = vpack.c.b16 %v235, %v231
    %v360 = vpack.c.b16 %v236, %v232
    %v361 = vpack.c.b16 %v237, %v233
    %v362 = vpack.c.b16 %v242, %v238
    %v363 = vpack.c.b16 %v243, %v239
    %v364 = vpack.c.b16 %v244, %v240
    %v365 = vpack.c.b16 %v245, %v241
    %v366 = vpack.c.b16 %v250, %v246
    %v367 = vpack.c.b16 %v251, %v247
    %v368 = vpack.c.b16 %v252, %v248
    %v369 = vpack.c.b16 %v253, %v249
    %v370 = vpack.c.b16 %v258, %v254
    %v371 = vpack.c.b16 %v259, %v255
    %v372 = vpack.c.b16 %v260, %v256
    %v373 = vpack.c.b16 %v261, %v257
    %v374 = vpack.c.b16 %v266, %v262
    %v375 = vpack.c.b16 %v267, %v263
    %v376 = vpack.c.b16 %v268, %v264
    %v377 = vpack.c.b16 %v269, %v265
    %v378 = vpack.c.b16 %v274, %v270
    %v379 = vpack.c.b16 %v275, %v271
    %v380 = vpack.c.b16 %v276, %v272
    %v381 = vpack.c.b16 %v277, %v273
    %v382 = vpack.c.b16 %v282, %v278
    %v383 = vpack.c.b16 %v283, %v279
    %v384 = vpack.c.b16 %v284, %v280
    %v385 = vpack.c.b16 %v285, %v281
    %v386 = vpack.c.b16 %v290, %v286
    %v387 = vpack.c.b16 %v291, %v287
    %v388 = vpack.c.b16 %v292, %v288
    %v389 = vpack.c.b16 %v293, %v289
    %v390 = vpack.c.b16 %v298, %v294
    %v391 = vpack.c.b16 %v299, %v295
    %v392 = vpack.c.b16 %v300, %v296
    %v393 = vpack.c.b16 %v301, %v297
    %v394 = vpack.c.b16 %v306, %v302
    %v395 = vpack.c.b16 %v307, %v303
    %v396 = vpack.c.b16 %v308, %v304
    %v397 = vpack.c.b16 %v309, %v305
    %v398 = vpack.c.b16 %v314, %v310
    %v399 = vpack.c.b16 %v315, %v311
    %v400 = vpack.c.b16 %v316, %v312
    %v401 = vpack.c.b16 %v317, %v313
    %v402 = vpack.c.b16 %v322, %v318
    %v403 = vpack.c.b16 %v323, %v319
    %v404 = vpack.c.b16 %v324, %v320
    %v405 = vpack.c.b16 %v325, %v321
    %v406 = vpack.c.b16 %v330, %v326
    %v407 = vpack.c.b16 %v331, %v327
    %v408 = vpack.c.b16 %v332, %v328
    %v409 = vpack.c.b16 %v333, %v329
    %v410 = vpack.c.b16 %v338, %v334
    %v411 = vpack.c.b16 %v339, %v335
    %v412 = vpack.c.b16 %v340, %v336
    %v413 = vpack.c.b16 %v341, %v337
    %v414 = vpack.c.b16 %v346, %v342
    %v415 = vpack.c.b16 %v347, %v343
    %v416 = vpack.c.b16 %v348, %v344
    %v417 = vpack.c.b16 %v349, %v345
    %v418 = vpack.c.b16 %v354, %v350
    %v419 = vpack.c.b16 %v355, %v351
    %v420 = vpack.c.b16 %v356, %v352
    %v421 = vpack.c.b16 %v357, %v353
    %486 = vmatprep.subr.bf16.mxu0 %v359
    %487 = vmatpush1.bf16.msra.mxu0 %v358
    %488 = vmatprep.subr.bf16.mxu0 %v363
    %489 = vmatpush1.bf16.msra.mxu0 %v362
    %490 = vmatprep.subr.bf16.mxu0 %v367
    %491 = vmatpush1.bf16.msra.mxu0 %v366
    %492 = vmatprep.subr.bf16.mxu0 %v371
    %493 = vmatpush1.bf16.msra.mxu0 %v370
    %494 = vmatprep.subr.bf16.mxu0 %v375
    %495 = vmatpush1.bf16.msra.mxu0 %v374
    %496 = vmatprep.subr.bf16.mxu0 %v379
    %497 = vmatpush1.bf16.msra.mxu0 %v378
    %498 = vmatprep.subr.bf16.mxu0 %v383
    %499 = vmatpush1.bf16.msra.mxu0 %v382
    %500 = vmatprep.subr.bf16.mxu0 %v387
    %501 = vmatpush1.bf16.msra.mxu0 %v386
    %502 = vmatprep.subr.bf16.mxu0 %v391
    %503 = vmatpush1.bf16.msra.mxu0 %v390
    %504 = vmatprep.subr.bf16.mxu0 %v395
    %505 = vmatpush1.bf16.msra.mxu0 %v394
    %506 = vmatprep.subr.bf16.mxu0 %v399
    %507 = vmatpush1.bf16.msra.mxu0 %v398
    %508 = vmatprep.subr.bf16.mxu0 %v403
    %509 = vmatpush1.bf16.msra.mxu0 %v402
    %510 = vmatprep.subr.bf16.mxu0 %v407
    %511 = vmatpush1.bf16.msra.mxu0 %v406
    %512 = vmatprep.subr.bf16.mxu0 %v411
    %513 = vmatpush1.bf16.msra.mxu0 %v410
    %514 = vmatprep.subr.bf16.mxu0 %v415
    %515 = vmatpush1.bf16.msra.mxu0 %v414
    %516 = vmatprep.subr.bf16.mxu0 %v419
    %517 = vmatpush1.bf16.msra.mxu0 %v418
    %518 = vmatprep.mubr.bf16.mxu0 %v163
    %519 = vmatmul.mubr.bf16.gmra.mrb[0].mxu0 %v162
    %v520 = vpop.f32.mrb[0].mxu0
    %v521 = vadd.f32 %v139, %v520
    %v522 = vpop.f32.mrb[0].mxu0
    %v523 = vadd.f32 %v143, %v522
    %v524 = vpop.f32.mrb[0].mxu0
    %v525 = vadd.f32 %v139, %v524
    %v526 = vpop.f32.mrb[0].mxu0
    %v527 = vadd.f32 %v143, %v526
    %528 = vdwg.mxu0
    %529 = vmatprep.subr.bf16.mxu0 %v361
    %530 = vmatpush1.bf16.msra.mxu0 %v360
    %531 = vmatprep.subr.bf16.mxu0 %v365
    %532 = vmatpush1.bf16.msra.mxu0 %v364
    %533 = vmatprep.subr.bf16.mxu0 %v369
    %534 = vmatpush1.bf16.msra.mxu0 %v368
    %535 = vmatprep.subr.bf16.mxu0 %v373
    %536 = vmatpush1.bf16.msra.mxu0 %v372
    %537 = vmatprep.subr.bf16.mxu0 %v377
    %538 = vmatpush1.bf16.msra.mxu0 %v376
    %539 = vmatprep.subr.bf16.mxu0 %v381
    %540 = vmatpush1.bf16.msra.mxu0 %v380
    %541 = vmatprep.subr.bf16.mxu0 %v385
    %542 = vmatpush1.bf16.msra.mxu0 %v384
    %543 = vmatprep.subr.bf16.mxu0 %v389
    %544 = vmatpush1.bf16.msra.mxu0 %v388
    %545 = vmatprep.subr.bf16.mxu0 %v393
    %546 = vmatpush1.bf16.msra.mxu0 %v392
    %547 = vmatprep.subr.bf16.mxu0 %v397
    %548 = vmatpush1.bf16.msra.mxu0 %v396
    %549 = vmatprep.subr.bf16.mxu0 %v401
    %550 = vmatpush1.bf16.msra.mxu0 %v400
    %551 = vmatprep.subr.bf16.mxu0 %v405
    %552 = vmatpush1.bf16.msra.mxu0 %v404
    %553 = vmatprep.subr.bf16.mxu0 %v409
    %554 = vmatpush1.bf16.msra.mxu0 %v408
    %555 = vmatprep.subr.bf16.mxu0 %v413
    %556 = vmatpush1.bf16.msra.mxu0 %v412
    %557 = vmatprep.subr.bf16.mxu0 %v417
    %558 = vmatpush1.bf16.msra.mxu0 %v416
    %559 = vmatprep.subr.bf16.mxu0 %v421
    %560 = vmatpush1.bf16.msra.mxu0 %v420
    %561 = vmatprep.mubr.bf16.mxu0 %v163
    %562 = vmatmul.mubr.bf16.gmra.mrb[0].mxu0 %v162
    %v563 = vpop.f32.mrb[0].mxu0
    %v564 = vadd.f32 %v147, %v563
    %v565 = vpop.f32.mrb[0].mxu0
    %v566 = vadd.f32 %v151, %v565
    %v567 = vpop.f32.mrb[0].mxu0
    %v568 = vadd.f32 %v147, %v567
    %v569 = vpop.f32.mrb[0].mxu0
    %v570 = vadd.f32 %v151, %v569
    %571 = vdwg.mxu0
    %v572 = vmax.f32 %v521, 0.0
    %v573 = vmax.f32 %v523, 0.0
    %v574 = vmax.f32 %v564, 0.0
    %v575 = vmax.f32 %v566, 0.0
    %v576 = vmax.f32 %v525, 0.0
    %v577 = vmax.f32 %v527, 0.0
    %v578 = vmax.f32 %v568, 0.0
    %v579 = vmax.f32 %v570, 0.0
    %v580 = vpack.c.bf16 %v576, %v572
    %v581 = vpack.c.bf16 %v577, %v573
    %v582 = vpack.c.bf16 %v578, %v574
    %v583 = vpack.c.bf16 %v579, %v575
    %v584 = vld [vmem:[#allocation7] sm:$0xff]
    %v585 = vld [vmem:[#allocation7 + $0x8] sm:$0xff]
    %v586 = vld [vmem:[#allocation7 + $0x10] sm:$0xff]
    %v587 = vld [vmem:[#allocation7 + $0x18] sm:$0xff]
    %v588 = vld [vmem:[#allocation7 + $0x20] sm:$0xff]
    %v589 = vld [vmem:[#allocation7 + $0x28] sm:$0xff]
    %v590 = vld [vmem:[#allocation7 + $0x30] sm:$0xff]
    %v591 = vld [vmem:[#allocation7 + $0x38] sm:$0xff]
    %v592 = vld [vmem:[#allocation7 + $0x40] sm:$0xff]
    %v593 = vld [vmem:[#allocation7 + $0x48] sm:$0xff]
    %v594 = vld [vmem:[#allocation7 + $0x50] sm:$0xff]
    %v595 = vld [vmem:[#allocation7 + $0x58] sm:$0xff]
    %v596 = vld [vmem:[#allocation7 + $0x60] sm:$0xff]
    %v597 = vld [vmem:[#allocation7 + $0x68] sm:$0xff]
    %v598 = vld [vmem:[#allocation7 + $0x70] sm:$0xff]
    %v599 = vld [vmem:[#allocation7 + $0x78] sm:$0xff]
    %v600 = vld [vmem:[#allocation7 + $0x80] sm:$0xff]
    %v601 = vld [vmem:[#allocation7 + $0x88] sm:$0xff]
    %v602 = vld [vmem:[#allocation7 + $0x90] sm:$0xff]
    %v603 = vld [vmem:[#allocation7 + $0x98] sm:$0xff]
    %v604 = vld [vmem:[#allocation7 + $0xa0] sm:$0xff]
    %v605 = vld [vmem:[#allocation7 + $0xa8] sm:$0xff]
    %v606 = vld [vmem:[#allocation7 + $0xb0] sm:$0xff]
    %v607 = vld [vmem:[#allocation7 + $0xb8] sm:$0xff]
    %v608 = vld [vmem:[#allocation7 + $0xc0] sm:$0xff]
    %v609 = vld [vmem:[#allocation7 + $0xc8] sm:$0xff]
    %v610 = vld [vmem:[#allocation7 + $0xd0] sm:$0xff]
    %v611 = vld [vmem:[#allocation7 + $0xd8] sm:$0xff]
    %v612 = vld [vmem:[#allocation7 + $0xe0] sm:$0xff]
    %v613 = vld [vmem:[#allocation7 + $0xe8] sm:$0xff]
    %v614 = vld [vmem:[#allocation7 + $0xf0] sm:$0xff]
    %v615 = vld [vmem:[#allocation7 + $0xf8] sm:$0xff]
    %v616 = vld [vmem:[#allocation7 + $0x100] sm:$0xff]
    %v617 = vld [vmem:[#allocation7 + $0x108] sm:$0xff]
    %v618 = vld [vmem:[#allocation7 + $0x110] sm:$0xff]
    %v619 = vld [vmem:[#allocation7 + $0x118] sm:$0xff]
    %v620 = vld [vmem:[#allocation7 + $0x120] sm:$0xff]
    %v621 = vld [vmem:[#allocation7 + $0x128] sm:$0xff]
    %v622 = vld [vmem:[#allocation7 + $0x130] sm:$0xff]
    %v623 = vld [vmem:[#allocation7 + $0x138] sm:$0xff]
    %v624 = vld [vmem:[#allocation7 + $0x140] sm:$0xff]
    %v625 = vld [vmem:[#allocation7 + $0x148] sm:$0xff]
    %v626 = vld [vmem:[#allocation7 + $0x150] sm:$0xff]
    %v627 = vld [vmem:[#allocation7 + $0x158] sm:$0xff]
    %v628 = vld [vmem:[#allocation7 + $0x160] sm:$0xff]
    %v629 = vld [vmem:[#allocation7 + $0x168] sm:$0xff]
    %v630 = vld [vmem:[#allocation7 + $0x170] sm:$0xff]
    %v631 = vld [vmem:[#allocation7 + $0x178] sm:$0xff]
    %v632 = vld [vmem:[#allocation7 + $0x180] sm:$0xff]
    %v633 = vld [vmem:[#allocation7 + $0x188] sm:$0xff]
    %v634 = vld [vmem:[#allocation7 + $0x190] sm:$0xff]
    %v635 = vld [vmem:[#allocation7 + $0x198] sm:$0xff]
    %v636 = vld [vmem:[#allocation7 + $0x1a0] sm:$0xff]
    %v637 = vld [vmem:[#allocation7 + $0x1a8] sm:$0xff]
    %v638 = vld [vmem:[#allocation7 + $0x1b0] sm:$0xff]
    %v639 = vld [vmem:[#allocation7 + $0x1b8] sm:$0xff]
    %v640 = vld [vmem:[#allocation7 + $0x1c0] sm:$0xff]
    %v641 = vld [vmem:[#allocation7 + $0x1c8] sm:$0xff]
    %v642 = vld [vmem:[#allocation7 + $0x1d0] sm:$0xff]
    %v643 = vld [vmem:[#allocation7 + $0x1d8] sm:$0xff]
    %v644 = vld [vmem:[#allocation7 + $0x1e0] sm:$0xff]
    %v645 = vld [vmem:[#allocation7 + $0x1e8] sm:$0xff]
    %v646 = vld [vmem:[#allocation7 + $0x1f0] sm:$0xff]
    %v647 = vld [vmem:[#allocation7 + $0x1f8] sm:$0xff]
    %v648 = vld [vmem:[%s4] sm:$0x3]
    %v650 = vlaneseq
    %v651 = vshrl.u32 %v650, 7
    %v652 = vsub.s32 0, %v651
    %v653 = vrot.slane %v648, %v652
    %v654 = vlaneseq
    %v655 = vshrl.u32 %v654, 7
    %v656 = vsub.s32 1, %v655
    %v657 = vrot.slane %v648, %v656
    %v724 = vunpack.c.l.b16 %v584
    %v725 = vunpack.c.h.b16 %v584
    %v726 = vunpack.c.l.b16 %v585
    %v727 = vunpack.c.h.b16 %v585
    %v728 = vunpack.c.l.b16 %v586
    %v729 = vunpack.c.h.b16 %v586
    %v730 = vunpack.c.l.b16 %v587
    %v731 = vunpack.c.h.b16 %v587
    %v732 = vunpack.c.l.b16 %v588
    %v733 = vunpack.c.h.b16 %v588
    %v734 = vunpack.c.l.b16 %v589
    %v735 = vunpack.c.h.b16 %v589
    %v736 = vunpack.c.l.b16 %v590
    %v737 = vunpack.c.h.b16 %v590
    %v738 = vunpack.c.l.b16 %v591
    %v739 = vunpack.c.h.b16 %v591
    %v740 = vunpack.c.l.b16 %v592
    %v741 = vunpack.c.h.b16 %v592
    %v742 = vunpack.c.l.b16 %v593
    %v743 = vunpack.c.h.b16 %v593
    %v744 = vunpack.c.l.b16 %v594
    %v745 = vunpack.c.h.b16 %v594
    %v746 = vunpack.c.l.b16 %v595
    %v747 = vunpack.c.h.b16 %v595
    %v748 = vunpack.c.l.b16 %v596
    %v749 = vunpack.c.h.b16 %v596
    %v750 = vunpack.c.l.b16 %v597
    %v751 = vunpack.c.h.b16 %v597
    %v752 = vunpack.c.l.b16 %v598
    %v753 = vunpack.c.h.b16 %v598
    %v754 = vunpack.c.l.b16 %v599
    %v755 = vunpack.c.h.b16 %v599
    %v756 = vunpack.c.l.b16 %v600
    %v757 = vunpack.c.h.b16 %v600
    %v758 = vunpack.c.l.b16 %v601
    %v759 = vunpack.c.h.b16 %v601
    %v760 = vunpack.c.l.b16 %v602
    %v761 = vunpack.c.h.b16 %v602
    %v762 = vunpack.c.l.b16 %v603
    %v763 = vunpack.c.h.b16 %v603
    %v764 = vunpack.c.l.b16 %v604
    %v765 = vunpack.c.h.b16 %v604
    %v766 = vunpack.c.l.b16 %v605
    %v767 = vunpack.c.h.b16 %v605
    %v768 = vunpack.c.l.b16 %v606
    %v769 = vunpack.c.h.b16 %v606
    %v770 = vunpack.c.l.b16 %v607
    %v771 = vunpack.c.h.b16 %v607
    %v772 = vunpack.c.l.b16 %v608
    %v773 = vunpack.c.h.b16 %v608
    %v774 = vunpack.c.l.b16 %v609
    %v775 = vunpack.c.h.b16 %v609
    %v776 = vunpack.c.l.b16 %v610
    %v777 = vunpack.c.h.b16 %v610
    %v778 = vunpack.c.l.b16 %v611
    %v779 = vunpack.c.h.b16 %v611
    %v780 = vunpack.c.l.b16 %v612
    %v781 = vunpack.c.h.b16 %v612
    %v782 = vunpack.c.l.b16 %v613
    %v783 = vunpack.c.h.b16 %v613
    %v784 = vunpack.c.l.b16 %v614
    %v785 = vunpack.c.h.b16 %v614
    %v786 = vunpack.c.l.b16 %v615
    %v787 = vunpack.c.h.b16 %v615
    %v788 = vunpack.c.l.b16 %v616
    %v789 = vunpack.c.h.b16 %v616
    %v790 = vunpack.c.l.b16 %v617
    %v791 = vunpack.c.h.b16 %v617
    %v792 = vunpack.c.l.b16 %v618
    %v793 = vunpack.c.h.b16 %v618
    %v794 = vunpack.c.l.b16 %v619
    %v795 = vunpack.c.h.b16 %v619
    %v796 = vunpack.c.l.b16 %v620
    %v797 = vunpack.c.h.b16 %v620
    %v798 = vunpack.c.l.b16 %v621
    %v799 = vunpack.c.h.b16 %v621
    %v800 = vunpack.c.l.b16 %v622
    %v801 = vunpack.c.h.b16 %v622
    %v802 = vunpack.c.l.b16 %v623
    %v803 = vunpack.c.h.b16 %v623
    %v804 = vunpack.c.l.b16 %v624
    %v805 = vunpack.c.h.b16 %v624
    %v806 = vunpack.c.l.b16 %v625
    %v807 = vunpack.c.h.b16 %v625
    %v808 = vunpack.c.l.b16 %v626
    %v809 = vunpack.c.h.b16 %v626
    %v810 = vunpack.c.l.b16 %v627
    %v811 = vunpack.c.h.b16 %v627
    %v812 = vunpack.c.l.b16 %v628
    %v813 = vunpack.c.h.b16 %v628
    %v814 = vunpack.c.l.b16 %v629
    %v815 = vunpack.c.h.b16 %v629
    %v816 = vunpack.c.l.b16 %v630
    %v817 = vunpack.c.h.b16 %v630
    %v818 = vunpack.c.l.b16 %v631
    %v819 = vunpack.c.h.b16 %v631
    %v820 = vunpack.c.l.b16 %v632
    %v821 = vunpack.c.h.b16 %v632
    %v822 = vunpack.c.l.b16 %v633
    %v823 = vunpack.c.h.b16 %v633
    %v824 = vunpack.c.l.b16 %v634
    %v825 = vunpack.c.h.b16 %v634
    %v826 = vunpack.c.l.b16 %v635
    %v827 = vunpack.c.h.b16 %v635
    %v828 = vunpack.c.l.b16 %v636
    %v829 = vunpack.c.h.b16 %v636
    %v830 = vunpack.c.l.b16 %v637
    %v831 = vunpack.c.h.b16 %v637
    %v832 = vunpack.c.l.b16 %v638
    %v833 = vunpack.c.h.b16 %v638
    %v834 = vunpack.c.l.b16 %v639
    %v835 = vunpack.c.h.b16 %v639
    %v836 = vunpack.c.l.b16 %v640
    %v837 = vunpack.c.h.b16 %v640
    %v838 = vunpack.c.l.b16 %v641
    %v839 = vunpack.c.h.b16 %v641
    %v840 = vunpack.c.l.b16 %v642
    %v841 = vunpack.c.h.b16 %v642
    %v842 = vunpack.c.l.b16 %v643
    %v843 = vunpack.c.h.b16 %v643
    %v844 = vunpack.c.l.b16 %v644
    %v845 = vunpack.c.h.b16 %v644
    %v846 = vunpack.c.l.b16 %v645
    %v847 = vunpack.c.h.b16 %v645
    %v848 = vunpack.c.l.b16 %v646
    %v849 = vunpack.c.h.b16 %v646
    %v850 = vunpack.c.l.b16 %v647
    %v851 = vunpack.c.h.b16 %v647
    %v852 = vpack.c.b16 %v726, %v724
    %v853 = vpack.c.b16 %v727, %v725
    %v854 = vpack.c.b16 %v730, %v728
    %v855 = vpack.c.b16 %v731, %v729
    %v856 = vpack.c.b16 %v734, %v732
    %v857 = vpack.c.b16 %v735, %v733
    %v858 = vpack.c.b16 %v738, %v736
    %v859 = vpack.c.b16 %v739, %v737
    %v860 = vpack.c.b16 %v742, %v740
    %v861 = vpack.c.b16 %v743, %v741
    %v862 = vpack.c.b16 %v746, %v744
    %v863 = vpack.c.b16 %v747, %v745
    %v864 = vpack.c.b16 %v750, %v748
    %v865 = vpack.c.b16 %v751, %v749
    %v866 = vpack.c.b16 %v754, %v752
    %v867 = vpack.c.b16 %v755, %v753
    %v868 = vpack.c.b16 %v758, %v756
    %v869 = vpack.c.b16 %v759, %v757
    %v870 = vpack.c.b16 %v762, %v760
    %v871 = vpack.c.b16 %v763, %v761
    %v872 = vpack.c.b16 %v766, %v764
    %v873 = vpack.c.b16 %v767, %v765
    %v874 = vpack.c.b16 %v770, %v768
    %v875 = vpack.c.b16 %v771, %v769
    %v876 = vpack.c.b16 %v774, %v772
    %v877 = vpack.c.b16 %v775, %v773
    %v878 = vpack.c.b16 %v778, %v776
    %v879 = vpack.c.b16 %v779, %v777
    %v880 = vpack.c.b16 %v782, %v780
    %v881 = vpack.c.b16 %v783, %v781
    %v882 = vpack.c.b16 %v786, %v784
    %v883 = vpack.c.b16 %v787, %v785
    %v884 = vpack.c.b16 %v790, %v788
    %v885 = vpack.c.b16 %v791, %v789
    %v886 = vpack.c.b16 %v794, %v792
    %v887 = vpack.c.b16 %v795, %v793
    %v888 = vpack.c.b16 %v798, %v796
    %v889 = vpack.c.b16 %v799, %v797
    %v890 = vpack.c.b16 %v802, %v800
    %v891 = vpack.c.b16 %v803, %v801
    %v892 = vpack.c.b16 %v806, %v804
    %v893 = vpack.c.b16 %v807, %v805
    %v894 = vpack.c.b16 %v810, %v808
    %v895 = vpack.c.b16 %v811, %v809
    %v896 = vpack.c.b16 %v814, %v812
    %v897 = vpack.c.b16 %v815, %v813
    %v898 = vpack.c.b16 %v818, %v816
    %v899 = vpack.c.b16 %v819, %v817
    %v900 = vpack.c.b16 %v822, %v820
    %v901 = vpack.c.b16 %v823, %v821
    %v902 = vpack.c.b16 %v826, %v824
    %v903 = vpack.c.b16 %v827, %v825
    %v904 = vpack.c.b16 %v830, %v828
    %v905 = vpack.c.b16 %v831, %v829
    %v906 = vpack.c.b16 %v834, %v832
    %v907 = vpack.c.b16 %v835, %v833
    %v908 = vpack.c.b16 %v838, %v836
    %v909 = vpack.c.b16 %v839, %v837
    %v910 = vpack.c.b16 %v842, %v840
    %v911 = vpack.c.b16 %v843, %v841
    %v912 = vpack.c.b16 %v846, %v844
    %v913 = vpack.c.b16 %v847, %v845
    %v914 = vpack.c.b16 %v850, %v848
    %v915 = vpack.c.b16 %v851, %v849
    %980 = vmatprep.subr.bf16.mxu0 %v853
    %981 = vmatpush1.bf16.msra.mxu0 %v852
    %982 = vmatprep.subr.bf16.mxu0 %v855
    %983 = vmatpush1.bf16.msra.mxu0 %v854
    %984 = vmatprep.subr.bf16.mxu0 %v857
    %985 = vmatpush1.bf16.msra.mxu0 %v856
    %986 = vmatprep.subr.bf16.mxu0 %v859
    %987 = vmatpush1.bf16.msra.mxu0 %v858
    %988 = vmatprep.subr.bf16.mxu0 %v861
    %989 = vmatpush1.bf16.msra.mxu0 %v860
    %990 = vmatprep.subr.bf16.mxu0 %v863
    %991 = vmatpush1.bf16.msra.mxu0 %v862
    %992 = vmatprep.subr.bf16.mxu0 %v865
    %993 = vmatpush1.bf16.msra.mxu0 %v864
    %994 = vmatprep.subr.bf16.mxu0 %v867
    %995 = vmatpush1.bf16.msra.mxu0 %v866
    %996 = vmatprep.subr.bf16.mxu0 %v869
    %997 = vmatpush1.bf16.msra.mxu0 %v868
    %998 = vmatprep.subr.bf16.mxu0 %v871
    %999 = vmatpush1.bf16.msra.mxu0 %v870
    %1000 = vmatprep.subr.bf16.mxu0 %v873
    %1001 = vmatpush1.bf16.msra.mxu0 %v872
    %1002 = vmatprep.subr.bf16.mxu0 %v875
    %1003 = vmatpush1.bf16.msra.mxu0 %v874
    %1004 = vmatprep.subr.bf16.mxu0 %v877
    %1005 = vmatpush1.bf16.msra.mxu0 %v876
    %1006 = vmatprep.subr.bf16.mxu0 %v879
    %1007 = vmatpush1.bf16.msra.mxu0 %v878
    %1008 = vmatprep.subr.bf16.mxu0 %v881
    %1009 = vmatpush1.bf16.msra.mxu0 %v880
    %1010 = vmatprep.subr.bf16.mxu0 %v883
    %1011 = vmatpush1.bf16.msra.mxu0 %v882
    %1012 = vmatprep.mubr.bf16.mxu0 %v581
    %1013 = vmatmul.mubr.bf16.gmra.mrb[0].mxu0 %v580
    %v1014 = vpop.f32.mrb[0].mxu0
    %v1015 = vadd.f32 %v653, %v1014
    %v1016 = vpop.f32.mrb[0].mxu0
    %v1017 = vadd.f32 %v657, %v1016
    %v1018 = vpop.f32.mrb[0].mxu0
    %v1019 = vadd.f32 %v653, %v1018
    %v1020 = vpop.f32.mrb[0].mxu0
    %v1021 = vadd.f32 %v657, %v1020
    %1022 = vdwg.mxu0
    %1023 = vmatprep.subr.bf16.mxu0 %v885
    %1024 = vmatpush1.bf16.msra.mxu0 %v884
    %1025 = vmatprep.subr.bf16.mxu0 %v887
    %1026 = vmatpush1.bf16.msra.mxu0 %v886
    %1027 = vmatprep.subr.bf16.mxu0 %v889
    %1028 = vmatpush1.bf16.msra.mxu0 %v888
    %1029 = vmatprep.subr.bf16.mxu0 %v891
    %1030 = vmatpush1.bf16.msra.mxu0 %v890
    %1031 = vmatprep.subr.bf16.mxu0 %v893
    %1032 = vmatpush1.bf16.msra.mxu0 %v892
    %1033 = vmatprep.subr.bf16.mxu0 %v895
    %1034 = vmatpush1.bf16.msra.mxu0 %v894
    %1035 = vmatprep.subr.bf16.mxu0 %v897
    %1036 = vmatpush1.bf16.msra.mxu0 %v896
    %1037 = vmatprep.subr.bf16.mxu0 %v899
    %1038 = vmatpush1.bf16.msra.mxu0 %v898
    %1039 = vmatprep.subr.bf16.mxu0 %v901
    %1040 = vmatpush1.bf16.msra.mxu0 %v900
    %1041 = vmatprep.subr.bf16.mxu0 %v903
    %1042 = vmatpush1.bf16.msra.mxu0 %v902
    %1043 = vmatprep.subr.bf16.mxu0 %v905
    %1044 = vmatpush1.bf16.msra.mxu0 %v904
    %1045 = vmatprep.subr.bf16.mxu0 %v907
    %1046 = vmatpush1.bf16.msra.mxu0 %v906
    %1047 = vmatprep.subr.bf16.mxu0 %v909
    %1048 = vmatpush1.bf16.msra.mxu0 %v908
    %1049 = vmatprep.subr.bf16.mxu0 %v911
    %1050 = vmatpush1.bf16.msra.mxu0 %v910
    %1051 = vmatprep.subr.bf16.mxu0 %v913
    %1052 = vmatpush1.bf16.msra.mxu0 %v912
    %1053 = vmatprep.subr.bf16.mxu0 %v915
    %1054 = vmatpush1.bf16.msra.mxu0 %v914
    %1055 = vmatprep.mubr.bf16.mxu0 %v583
    %1056 = vmatmul.mubr.bf16.gmra.mrb[0].mxu0 %v582
    %v1057 = vpop.f32.mrb[0].mxu0
    %v1058 = vadd.f32 %v1015, %v1057
    %v1059 = vpop.f32.mrb[0].mxu0
    %v1060 = vadd.f32 %v1017, %v1059
    %v1061 = vpop.f32.mrb[0].mxu0
    %v1062 = vadd.f32 %v1019, %v1061
    %v1063 = vpop.f32.mrb[0].mxu0
    %v1064 = vadd.f32 %v1021, %v1063
    %1065 = vdwg.mxu0
    %v1066 = vunpack.c.l.bf16 %v68
    %v1067 = vunpack.c.h.bf16 %v68
    %v1068 = vunpack.c.l.bf16 %v69
    %v1069 = vunpack.c.h.bf16 %v69
    %v1070 = vadd.f32 %v1066, %v1058
    %v1071 = vadd.f32 %v1067, %v1060
    %v1072 = vadd.f32 %v1068, %v1062
    %v1073 = vadd.f32 %v1069, %v1064
    %v1074 = vadd.f32 %v1070, %v1071
    %1075 = vadd.xlane.f32.xlu0 %v1074
    %v1076 = vpop.xlane.xlu0 %1075
    %v1077 = vadd.f32 %v1072, %v1073
    %1078 = vadd.xlane.f32.xlu0 %v1077
    %v1079 = vpop.xlane.xlu0 %1078
    %v1080 = vrcp.pop 256.0
    %v1081 = vmul.f32 %v1076, %v1080
    %v1082 = vmul.f32 %v1079, %v1080
    %v1083 = vsub.f32 %v1070, %v1081
    %v1084 = vsub.f32 %v1071, %v1081
    %v1085 = vsub.f32 %v1072, %v1082
    %v1086 = vsub.f32 %v1073, %v1082
    %v1087 = vmul.f32 %v1083, %v1083
    %v1088 = vmul.f32 %v1084, %v1084
    %v1089 = vmul.f32 %v1085, %v1085
    %v1090 = vmul.f32 %v1086, %v1086
    %v1091 = vadd.f32 %v1087, %v1088
    %1092 = vadd.xlane.f32.xlu0 %v1091
    %v1093 = vpop.xlane.xlu0 %1092
    %v1094 = vadd.f32 %v1089, %v1090
    %1095 = vadd.xlane.f32.xlu0 %v1094
    %v1096 = vpop.xlane.xlu0 %1095
    %v1097 = vmul.f32 %v1093, %v1080
    %v1098 = vmul.f32 %v1096, %v1080
    %v1099 = vadd.f32 %v1097, 1e-05
    %v1100 = vadd.f32 %v1098, 1e-05
    %v1101 = vrsqrt.pop %v1099
    %v1102 = vrsqrt.pop %v1100
    %v1103 = vmul.f32 %v1083, %v1101
    %v1104 = vmul.f32 %v1084, %v1101
    %v1105 = vmul.f32 %v1085, %v1102
    %v1106 = vmul.f32 %v1086, %v1102
    %v1107 = vld [vmem:[%s5] sm:$0x3]
    %v1109 = vlaneseq
    %v1110 = vshrl.u32 %v1109, 7
    %v1111 = vsub.s32 0, %v1110
    %v1112 = vrot.slane %v1107, %v1111
    %v1113 = vlaneseq
    %v1114 = vshrl.u32 %v1113, 7
    %v1115 = vsub.s32 1, %v1114
    %v1116 = vrot.slane %v1107, %v1115
    %v1119 = vmul.f32 %v1103, %v1112
    %v1120 = vmul.f32 %v1104, %v1116
    %v1121 = vmul.f32 %v1105, %v1112
    %v1122 = vmul.f32 %v1106, %v1116
    %v1123 = vld [vmem:[%s6] sm:$0x3]
    %v1125 = vlaneseq
    %v1126 = vshrl.u32 %v1125, 7
    %v1127 = vsub.s32 0, %v1126
    %v1128 = vrot.slane %v1123, %v1127
    %v1129 = vlaneseq
    %v1130 = vshrl.u32 %v1129, 7
    %v1131 = vsub.s32 1, %v1130
    %v1132 = vrot.slane %v1123, %v1131
    %v1135 = vadd.f32 %v1119, %v1128
    %v1136 = vadd.f32 %v1120, %v1132
    %v1137 = vadd.f32 %v1121, %v1128
    %v1138 = vadd.f32 %v1122, %v1132
    %v1139 = vpack.c.bf16 %v1137, %v1135
    %v1140 = vpack.c.bf16 %v1138, %v1136
    %v1143 = vunpack.c.l.b16 %v1139
    %v1144 = vunpack.c.l.b16 %v1140
    %v1145 = vunpack.c.h.b16 %v1139
    %v1146 = vunpack.c.h.b16 %v1140
    %v1147 = vpack.c.b16 %v1144, %v1143
    %v1148 = vpack.c.b16 %v1146, %v1145
    %1151 = vst [vmem:[#allocation8] sm:$0xff] %v1147
    %1152 = vst [vmem:[#allocation8 + $0x8] sm:$0xff] %v1148
    // Predicated region
    $region42: #{tpu_custom_call.1} parent=1 // pred_check
      _
    $region43: #{tpu_custom_call.1} parent=1 // pred_check_branch
      %1154 = sbr.rel (0) target = $region45
    $region44: #{tpu_custom_call.1} parent=1 // pred_region
      %s1156 = ssub.s32 256, 256
      %1157 = vsyncadd [#allocation4], %s1156
      %s1158 = sshll.u32 [#allocation8], 4
      %s1159 = int_to_ptr.vmem [resolvable:$true] %s1158
      %1164 = dma.vmem_to_hbm [thread:$0]  %s1159, 256, %s7, [#allocation4], 128, 128, 8
    $region45: #{tpu_custom_call.1} parent=1 // pred_fallthru
      _
    // Predicated region
    $region46: #{tpu_custom_call.1} parent=1 // pred_check
      _
    $region47: #{tpu_custom_call.1} parent=1 // pred_check_branch
      %1166 = sbr.rel (0) target = $region49
    $region48: #{tpu_custom_call.1} parent=1 // pred_region
      %1167 = dma.done [#allocation4], 256
    $region49: #{tpu_custom_call.1} parent=1 // pred_fallthru
      _
    %1168 = vsyncpa [#allocation3], 1
    %1169 = vsyncpa [#allocation6], 1
    %1170 = vsyncpa [#allocation4], 1

</llo_original>
